<compile_context>
chip_gen: v7x
topology: tpu7x:2x2x1
jax: 0.10.0
libtpu: 0.0.40
codegen_flags: <defaults>
</compile_context>

<pallas_src>
import jax
import jax.numpy as jnp
from jax.experimental import pallas as pl
from jax.experimental.pallas import tpu as pltpu

SIZE = 32            # LayerNorm(size)
DROPOUT_P = 0.1      # dropout rate from __init__
EPS = 1e-5           # nn.LayerNorm default eps

_KEEP_SCALE = 1.0 / (1.0 - DROPOUT_P)          # inverted dropout scale
_DROP_THRESHOLD = int(DROPOUT_P * (1 << 32))    # drop iff bits < threshold
_MAX_TILE_ROWS = 4096                           # 4096*32*4B = 512 KiB / buffer


# ------------------------------------------------------------------ PRNG ---

def _hash_u32(v):
    """Murmur3-style 32-bit finalizer (counter-based PRNG, plain VPU ops)."""
    v = v ^ (v >> 16)
    v = v * jnp.uint32(0x7FEB352D)
    v = v ^ (v >> 15)
    v = v * jnp.uint32(0x846CA68B)
    v = v ^ (v >> 16)
    return v


def _dropout_keep_mask(global_row_u32, col_u32, d, seed_u32):
    """Boolean keep-mask, identical for kernel and pure-JAX reference."""
    idx = global_row_u32 * jnp.uint32(d) + col_u32
    key = seed_u32 * jnp.uint32(0x9E3779B9)
    bits = _hash_u32(idx * jnp.uint32(0x85EBCA6B) + key)
    return bits >= jnp.uint32(_DROP_THRESHOLD)       # P(keep) = 1 - p


# ---------------------------------------------------------------- kernel ---

def _sublayer_connection_kernel(seed_ref, x_ref, g_ref, beta_ref,
                                w_ref, b_ref, o_ref):
    tr, d = x_ref.shape

    # ---- LayerNorm over the last (lane) axis, stats in f32 ----
    x = x_ref[...].astype(jnp.float32)
    mean = jnp.mean(x, axis=-1, keepdims=True)
    cen = x - mean
    var = jnp.mean(cen * cen, axis=-1, keepdims=True)
    normed = cen * jax.lax.rsqrt(var + EPS)
    normed = normed * g_ref[...].astype(jnp.float32) + beta_ref[...].astype(jnp.float32)

    # ---- fused linear sublayer (W, b stay VMEM-resident: constant index_map) ----
    sub = jnp.dot(normed, w_ref[...].astype(jnp.float32),
                  preferred_element_type=jnp.float32)
    sub = sub + b_ref[...].astype(jnp.float32)

    # ---- dropout (integer-domain threshold, per-tile unique stream) + residual ----
    rows = jax.lax.broadcasted_iota(jnp.int32, (tr, d), 0).astype(jnp.uint32)
    cols = jax.lax.broadcasted_iota(jnp.int32, (tr, d), 1).astype(jnp.uint32)
    row_off = (pl.program_id(0) * tr).astype(jnp.uint32)    # global row offset
    keep = _dropout_keep_mask(rows + row_off, cols, d,
                              seed_ref[0].astype(jnp.uint32))
    o_ref[...] = (x + jnp.where(keep, sub * jnp.float32(_KEEP_SCALE), 0.0)
                  ).astype(o_ref.dtype)


# --------------------------------------------------------------- wrapper ---

def sublayer_connection(x, gamma, beta, W, b, *, seed=0):
    """x: (batch, seq, size). Returns x + dropout(linear(layer_norm(x)))."""
    B, S, D = x.shape
    R = B * S
    x2d = x.reshape(R, D)

    TR = R if R <= _MAX_TILE_ROWS else _MAX_TILE_ROWS
    grid = (pl.cdiv(R, TR),)

    out2d = pl.pallas_call(
        _sublayer_connection_kernel,
        out_shape=jax.ShapeDtypeStruct((R, D), x.dtype),
        grid=grid,
        in_specs=[
            pl.BlockSpec(memory_space=pltpu.MemorySpace.SMEM),   # seed scalar
            pl.BlockSpec((TR, D), lambda i: (i, 0)),             # x row tile
            pl.BlockSpec((1, D), lambda i: (0, 0)),              # gamma
            pl.BlockSpec((1, D), lambda i: (0, 0)),              # beta
            pl.BlockSpec((D, D), lambda i: (0, 0)),              # W (resident)
            pl.BlockSpec((1, D), lambda i: (0, 0)),              # b
        ],
        out_specs=pl.BlockSpec((TR, D), lambda i: (i, 0)),
        compiler_params=pltpu.CompilerParams(
            dimension_semantics=("parallel",),      # shard tiles across v7x TCs
            vmem_limit_bytes=32 * 1024 * 1024,
        ),
    )(jnp.asarray([seed], jnp.int32), x2d,
      gamma.reshape(1, D), beta.reshape(1, D), W, b.reshape(1, D))
    return out2d.reshape(B, S, D)


# -------------------------------------------------------------- reference ---

def _reference(x, gamma, beta, W, b, seed):
    B, S, D = x.shape
    R = B * S
    xf = x.reshape(R, D).astype(jnp.float32)
    mean = jnp.mean(xf, axis=-1, keepdims=True)
    cen = xf - mean
    var = jnp.mean(cen * cen, axis=-1, keepdims=True)
    normed = cen * jax.lax.rsqrt(var + EPS) * gamma + beta
    sub = normed @ W.astype(jnp.float32) + b
    rows = jnp.arange(R, dtype=jnp.uint32)[:, None]
    cols = jnp.arange(D, dtype=jnp.uint32)[None, :]
    keep = _dropout_keep_mask(rows, cols, D, jnp.uint32(seed))
    out = xf + jnp.where(keep, sub * jnp.float32(_KEEP_SCALE), 0.0)
    return out.reshape(B, S, D).astype(x.dtype)


# ------------------------------------------------------------------- main ---

if __name__ == "__main__":
    key = jax.random.PRNGKey(0)
    B, S, D = 2, 8, SIZE
    kx, kw, kb = jax.random.split(key, 3)

    x = jax.random.normal(kx, (B, S, D), dtype=jnp.float32)

    # LayerNorm parameters (nn.LayerNorm init: weight=1, bias=0)
    gamma = jnp.ones((D,), jnp.float32)
    beta = jnp.zeros((D,), jnp.float32)

    # Deterministic example sublayer: a small linear layer.
    W = jax.random.normal(kw, (D, D), jnp.float32) / jnp.sqrt(D)
    b = 0.01 * jax.random.normal(kb, (D,), jnp.float32)

    out = sublayer_connection(x, gamma, beta, W, b, seed=0)
    out = jax.block_until_ready(out)

    assert out.shape == (B, S, D)
    assert bool(jnp.all(jnp.isfinite(out)))

    ref = _reference(x, gamma, beta, W, b, seed=0)
    max_err = float(jnp.max(jnp.abs(out - ref)))
    assert bool(jnp.allclose(out, ref, atol=5e-2, rtol=5e-2)), max_err

    print("KERNEL_OK")
</pallas_src>

<mosaic_0001>
module attributes {stable_mosaic.version = 11 : i64} {
  func.func @_sublayer_connection_kernel(%arg0: i32, %arg1: memref<1xi32, #tpu.memory_space<smem>>, %arg2: memref<16x32xf32, #tpu.memory_space<vmem>>, %arg3: memref<1x32xf32, #tpu.memory_space<vmem>>, %arg4: memref<1x32xf32, #tpu.memory_space<vmem>>, %arg5: memref<32x32xf32, #tpu.memory_space<vmem>>, %arg6: memref<1x32xf32, #tpu.memory_space<vmem>>, %arg7: memref<16x32xf32, #tpu.memory_space<vmem>>) attributes {dimension_semantics = [#tpu.dimension_semantics<parallel>], iteration_bounds = array<i64: 1>, scalar_prefetch = 0 : i64, scratch_operands = 0 : i64, tpu.core_type = #tpu.core_type<tc>, window_params = [{transform_indices = @transform_0, window_bounds = array<i64: 1>}, {transform_indices = @transform_1, window_bounds = array<i64: 16, 32>}, {pipeline_mode = #tpu.pipeline_mode<synchronous>, transform_indices = @transform_2, window_bounds = array<i64: 1, 32>}, {pipeline_mode = #tpu.pipeline_mode<synchronous>, transform_indices = @transform_3, window_bounds = array<i64: 1, 32>}, {pipeline_mode = #tpu.pipeline_mode<synchronous>, transform_indices = @transform_4, window_bounds = array<i64: 32, 32>}, {pipeline_mode = #tpu.pipeline_mode<synchronous>, transform_indices = @transform_5, window_bounds = array<i64: 1, 32>}, {transform_indices = @transform_6, window_bounds = array<i64: 16, 32>}]} {
    %c0 = arith.constant 0 : index
    %c0_0 = arith.constant 0 : index
    %0 = vector.load %arg2[%c0, %c0_0] : memref<16x32xf32, #tpu.memory_space<vmem>>, vector<16x32xf32>
    %cst = arith.constant dense<0.000000e+00> : vector<16xf32>
    %1 = vector.multi_reduction <add>, %0, %cst [1] : vector<16x32xf32> to vector<16xf32>
    %2 = vector.shape_cast %1 : vector<16xf32> to vector<16x1xf32>
    %cst_1 = arith.constant 3.200000e+01 : f32
    %3 = vector.broadcast %cst_1 : f32 to vector<16x1xf32>
    %4 = arith.divf %2, %3 : vector<16x1xf32>
    %5 = vector.broadcast %4 : vector<16x1xf32> to vector<16x32xf32>
    %6 = arith.subf %0, %5 : vector<16x32xf32>
    %7 = arith.mulf %6, %6 : vector<16x32xf32>
    %cst_2 = arith.constant dense<0.000000e+00> : vector<16xf32>
    %8 = vector.multi_reduction <add>, %7, %cst_2 [1] : vector<16x32xf32> to vector<16xf32>
    %9 = vector.shape_cast %8 : vector<16xf32> to vector<16x1xf32>
    %cst_3 = arith.constant 3.200000e+01 : f32
    %10 = vector.broadcast %cst_3 : f32 to vector<16x1xf32>
    %11 = arith.divf %9, %10 : vector<16x1xf32>
    %cst_4 = arith.constant 9.99999974E-6 : f32
    %12 = vector.broadcast %cst_4 : f32 to vector<16x1xf32>
    %13 = arith.addf %11, %12 : vector<16x1xf32>
    %14 = math.rsqrt %13 : vector<16x1xf32>
    %15 = vector.broadcast %14 : vector<16x1xf32> to vector<16x32xf32>
    %16 = arith.mulf %6, %15 : vector<16x32xf32>
    %c0_5 = arith.constant 0 : index
    %c0_6 = arith.constant 0 : index
    %17 = vector.load %arg3[%c0_5, %c0_6] : memref<1x32xf32, #tpu.memory_space<vmem>>, vector<1x32xf32>
    %18 = vector.broadcast %17 : vector<1x32xf32> to vector<16x32xf32>
    %19 = arith.mulf %16, %18 : vector<16x32xf32>
    %c0_7 = arith.constant 0 : index
    %c0_8 = arith.constant 0 : index
    %20 = vector.load %arg4[%c0_7, %c0_8] : memref<1x32xf32, #tpu.memory_space<vmem>>, vector<1x32xf32>
    %21 = vector.broadcast %20 : vector<1x32xf32> to vector<16x32xf32>
    %22 = arith.addf %19, %21 : vector<16x32xf32>
    %c0_9 = arith.constant 0 : index
    %c0_10 = arith.constant 0 : index
    %23 = vector.load %arg5[%c0_9, %c0_10] : memref<32x32xf32, #tpu.memory_space<vmem>>, vector<32x32xf32>
    %cst_11 = arith.constant dense<0.000000e+00> : vector<16x32xf32>
    %24 = tpu.matmul %22, %23, %cst_11 {dimension_numbers = #tpu.dot_dimension_numbers<[1], [0], [0], [1], [0, 0, 1, 1], [], []>} : vector<16x32xf32>, vector<32x32xf32>, vector<16x32xf32> -> vector<16x32xf32>
    %c0_12 = arith.constant 0 : index
    %c0_13 = arith.constant 0 : index
    %25 = vector.load %arg6[%c0_12, %c0_13] : memref<1x32xf32, #tpu.memory_space<vmem>>, vector<1x32xf32>
    %26 = vector.broadcast %25 : vector<1x32xf32> to vector<16x32xf32>
    %27 = arith.addf %24, %26 : vector<16x32xf32>
    %28 = tpu.iota {dimensions = array<i32: 0>} : vector<16x32xi32>
    %29 = tpu.iota {dimensions = array<i32: 1>} : vector<16x32xi32>
    %c16_i32 = arith.constant 16 : i32
    %30 = arith.muli %arg0, %c16_i32 : i32
    %31 = vector.broadcast %30 : i32 to vector<16x32xi32>
    %32 = arith.addi %28, %31 : vector<16x32xi32>
    %c0_14 = arith.constant 0 : index
    %33 = memref.load %arg1[%c0_14] : memref<1xi32, #tpu.memory_space<smem>>
    %c32_i32 = arith.constant 32 : i32
    %34 = vector.broadcast %c32_i32 : i32 to vector<16x32xi32>
    %35 = arith.muli %32, %34 : vector<16x32xi32>
    %36 = arith.addi %35, %29 : vector<16x32xi32>
    %c-1640531527_i32 = arith.constant -1640531527 : i32
    %37 = arith.muli %33, %c-1640531527_i32 : i32
    %c-2048144789_i32 = arith.constant -2048144789 : i32
    %38 = vector.broadcast %c-2048144789_i32 : i32 to vector<16x32xi32>
    %39 = arith.muli %36, %38 : vector<16x32xi32>
    %40 = vector.broadcast %37 : i32 to vector<16x32xi32>
    %41 = arith.addi %39, %40 : vector<16x32xi32>
    %c16_i32_15 = arith.constant 16 : i32
    %42 = vector.broadcast %c16_i32_15 : i32 to vector<16x32xi32>
    %43 = arith.shrui %41, %42 : vector<16x32xi32>
    %44 = arith.xori %41, %43 : vector<16x32xi32>
    %c2146121005_i32 = arith.constant 2146121005 : i32
    %45 = vector.broadcast %c2146121005_i32 : i32 to vector<16x32xi32>
    %46 = arith.muli %44, %45 : vector<16x32xi32>
    %c15_i32 = arith.constant 15 : i32
    %47 = vector.broadcast %c15_i32 : i32 to vector<16x32xi32>
    %48 = arith.shrui %46, %47 : vector<16x32xi32>
    %49 = arith.xori %46, %48 : vector<16x32xi32>
    %c-2073254261_i32 = arith.constant -2073254261 : i32
    %50 = vector.broadcast %c-2073254261_i32 : i32 to vector<16x32xi32>
    %51 = arith.muli %49, %50 : vector<16x32xi32>
    %c16_i32_16 = arith.constant 16 : i32
    %52 = vector.broadcast %c16_i32_16 : i32 to vector<16x32xi32>
    %53 = arith.shrui %51, %52 : vector<16x32xi32>
    %54 = arith.xori %51, %53 : vector<16x32xi32>
    %c429496729_i32 = arith.constant 429496729 : i32
    %55 = vector.broadcast %c429496729_i32 : i32 to vector<16x32xi32>
    %56 = arith.cmpi uge, %54, %55 : vector<16x32xi32>
    %cst_17 = arith.constant 1.11111116 : f32
    %57 = vector.broadcast %cst_17 : f32 to vector<16x32xf32>
    %58 = arith.mulf %27, %57 : vector<16x32xf32>
    %cst_18 = arith.constant 0.000000e+00 : f32
    %59 = vector.broadcast %cst_18 : f32 to vector<16x32xf32>
    %60 = arith.select %56, %58, %59 : vector<16x32xi1>, vector<16x32xf32>
    %61 = arith.addf %0, %60 : vector<16x32xf32>
    %c0_19 = arith.constant 0 : index
    %c0_20 = arith.constant 0 : index
    %62 = vector.load %arg7[%c0_19, %c0_20] : memref<16x32xf32, #tpu.memory_space<vmem>>, vector<16x32xf32>
    tpu.vector_store %arg7[%c0_19, %c0_20], %61 {strides = array<i32>} : memref<16x32xf32, #tpu.memory_space<vmem>>, vector<16x32xf32>,
    return
  }
  func.func @transform_0(%arg0: i32) -> i32 {
    %c0_i32 = arith.constant 0 : i32
    %c0_i32_0 = arith.constant 0 : i32
    return %c0_i32 : i32
  }
  func.func @transform_1(%arg0: i32) -> (i32, i32) {
    %c0_i32 = arith.constant 0 : i32
    %c0_i32_0 = arith.constant 0 : i32
    return %arg0, %c0_i32 : i32, i32
  }
  func.func @transform_2(%arg0: i32) -> (i32, i32) {
    %c0_i32 = arith.constant 0 : i32
    %c0_i32_0 = arith.constant 0 : i32
    %c0_i32_1 = arith.constant 0 : i32
    return %c0_i32, %c0_i32_0 : i32, i32
  }
  func.func @transform_3(%arg0: i32) -> (i32, i32) {
    %c0_i32 = arith.constant 0 : i32
    %c0_i32_0 = arith.constant 0 : i32
    %c0_i32_1 = arith.constant 0 : i32
    return %c0_i32, %c0_i32_0 : i32, i32
  }
  func.func @transform_4(%arg0: i32) -> (i32, i32) {
    %c0_i32 = arith.constant 0 : i32
    %c0_i32_0 = arith.constant 0 : i32
    %c0_i32_1 = arith.constant 0 : i32
    return %c0_i32, %c0_i32_0 : i32, i32
  }
  func.func @transform_5(%arg0: i32) -> (i32, i32) {
    %c0_i32 = arith.constant 0 : i32
    %c0_i32_0 = arith.constant 0 : i32
    %c0_i32_1 = arith.constant 0 : i32
    return %c0_i32, %c0_i32_0 : i32, i32
  }
  func.func @transform_6(%arg0: i32) -> (i32, i32) {
    %c0_i32 = arith.constant 0 : i32
    %c0_i32_0 = arith.constant 0 : i32
    return %arg0, %c0_i32 : i32, i32
  }
}

</mosaic_0001>

<llo_original>
// kernel: tpu_custom_call.1
$region0: #{tpu_custom_call.1}
  #allocation0 [shape = 'u32[]', space=smem, size = 0x4, offset = 0x4, fixed_abs, tag = 'smem constant byte address 0x4 - core index']
  #allocation1 [shape = 'u32[144,128]{1,0:T(1,128)}', space=vmem, size = 0x12000, scoped, tag = 'internal scratch']
  #allocation2 [shape = 's32[1]{0:T(128)S(6)}', space=smem, size = 0x200, scoped, tag = 'scoped memory for tpu_custom_call.1']
  %s0 = inlined_call_operand.<no memory space> [shape: s32[1], index: 0, kind: input, shape index: {}]
  %s1 = inlined_call_operand.hbm [shape: f32[16,32], index: 1, kind: input, shape index: {}]
  %s2 = inlined_call_operand.vmem [shape: f32[1,32], index: 2, kind: input, shape index: {}]
  %s3 = inlined_call_operand.vmem [shape: f32[1,32], index: 3, kind: input, shape index: {}]
  %s4 = inlined_call_operand.hbm [shape: f32[32,32], index: 4, kind: input, shape index: {}]
  %s5 = inlined_call_operand.vmem [shape: f32[1,32], index: 5, kind: input, shape index: {}]
  %s6 = inlined_call_operand.hbm [shape: f32[16,32], index: 6, kind: output, shape index: {}]
  %s7 = sld [smem:[#allocation0]]
  $region42: #{tpu_custom_call.1} parent=0
    _
  %s9 = ssub.s32 1, %s7
  %s10 = scalar_select 0, %s9, %s7
  %11 = sst [smem:[#allocation2]] %s0
  $region1: #{tpu_custom_call.1} parent=0
    #allocation3 [shape = 'u8[8192]{0}', space=vmem, size = 0x2000, scoped, tag = 'input window, operand 1, single buffered']
    #allocation4 [shape = 's32[1]{0}', space=sflag, size = 0x4, scoped, tag = 'scoped memory for tpu_custom_call.1']
    #allocation5 [shape = 's32[1]{0}', space=sflag, size = 0x4, scoped, tag = 'scoped memory for tpu_custom_call.1']
    #allocation6 [shape = 'u8[16384]{0}', space=vmem, size = 0x4000, scoped, tag = 'input window, operand 4, single buffered']
    #allocation7 [shape = 's32[1]{0}', space=sflag, size = 0x4, scoped, tag = 'scoped memory for tpu_custom_call.1']
    #allocation8 [shape = 'u8[8192]{0}', space=vmem, size = 0x2000, scoped, tag = 'output window, operand 0, single buffered']
    %12 = vsyncpa [#allocation4], 0
    %13 = vsyncpa [#allocation7], 0
    %14 = vsyncpa [#allocation5], 0
    // Predicated region
    $region2: #{tpu_custom_call.1} parent=1 // pred_check
      _
    $region3: #{tpu_custom_call.1} parent=1 // pred_check_branch
      %16 = sbr.rel (0) target = $region5
    $region4: #{tpu_custom_call.1} parent=1 // pred_region
      _
    $region5: #{tpu_custom_call.1} parent=1 // pred_fallthru
      _
    // Predicated region
    $region6: #{tpu_custom_call.1} parent=1 // pred_check
      _
    $region7: #{tpu_custom_call.1} parent=1 // pred_check_branch
      %18 = sbr.rel (0) target = $region9
    $region8: #{tpu_custom_call.1} parent=1 // pred_region
      %s20 = ssub.s32 256, 256
      %21 = vsyncadd [#allocation4], %s20
      %s22 = sshll.u32 [#allocation3], 4
      %s23 = int_to_ptr.vmem [resolvable:$true] %s22
      %28 = dma.hbm_to_vmem [thread:$0]  %s1, 256, %s23, [#allocation4], 128, 128, 8
    $region9: #{tpu_custom_call.1} parent=1 // pred_fallthru
      _
    // Predicated region
    $region10: #{tpu_custom_call.1} parent=1 // pred_check
      _
    $region11: #{tpu_custom_call.1} parent=1 // pred_check_branch
      %30 = sbr.rel (0) target = $region13
    $region12: #{tpu_custom_call.1} parent=1 // pred_region
      _
    $region13: #{tpu_custom_call.1} parent=1 // pred_fallthru
      _
    // Predicated region
    $region14: #{tpu_custom_call.1} parent=1 // pred_check
      _
    $region15: #{tpu_custom_call.1} parent=1 // pred_check_branch
      %32 = sbr.rel (0) target = $region17
    $region16: #{tpu_custom_call.1} parent=1 // pred_region
      _
    $region17: #{tpu_custom_call.1} parent=1 // pred_fallthru
      _
    // Predicated region
    $region18: #{tpu_custom_call.1} parent=1 // pred_check
      _
    $region19: #{tpu_custom_call.1} parent=1 // pred_check_branch
      %34 = sbr.rel (0) target = $region21
    $region20: #{tpu_custom_call.1} parent=1 // pred_region
      %s36 = ssub.s32 512, 512
      %37 = vsyncadd [#allocation7], %s36
      %s38 = sshll.u32 [#allocation6], 4
      %s39 = int_to_ptr.vmem [resolvable:$true] %s38
      %44 = dma.hbm_to_vmem [thread:$0]  %s4, 512, %s39, [#allocation7], 128, 128, 8
    $region21: #{tpu_custom_call.1} parent=1 // pred_fallthru
      _
    // Predicated region
    $region22: #{tpu_custom_call.1} parent=1 // pred_check
      _
    $region23: #{tpu_custom_call.1} parent=1 // pred_check_branch
      %46 = sbr.rel (0) target = $region25
    $region24: #{tpu_custom_call.1} parent=1 // pred_region
      _
    $region25: #{tpu_custom_call.1} parent=1 // pred_fallthru
      _
    // Predicated region
    $region26: #{tpu_custom_call.1} parent=1 // pred_check
      _
    $region27: #{tpu_custom_call.1} parent=1 // pred_check_branch
      %48 = sbr.rel (0) target = $region29
    $region28: #{tpu_custom_call.1} parent=1 // pred_region
      %49 = dma.done [#allocation4], 256
    $region29: #{tpu_custom_call.1} parent=1 // pred_fallthru
      _
    // Predicated region
    $region30: #{tpu_custom_call.1} parent=1 // pred_check
      _
    $region31: #{tpu_custom_call.1} parent=1 // pred_check_branch
      %51 = sbr.rel (0) target = $region33
    $region32: #{tpu_custom_call.1} parent=1 // pred_region
      %52 = dma.done [#allocation7], 512
    $region33: #{tpu_custom_call.1} parent=1 // pred_fallthru
      _
    %v53 = vld [vmem:[#allocation3] sm:$0xff]
    %v54 = vld [vmem:[#allocation3 + $0x8] sm:$0xff]
    %vm55 = vcmask 261120
    %v56 = vsel %vm55, %v53, 0.0
    %57 = vadd.xlane.f32.xlu0 %v56
    %v58 = vpop.xlane.xlu0 %57
    %v59 = vsel %vm55, %v54, 0.0
    %60 = vadd.xlane.f32.xlu0 %v59
    %v61 = vpop.xlane.xlu0 %60
    %v62 = vrcp.pop 32.0
    %v63 = vmul.f32 %v58, %v62
    %v64 = vmul.f32 %v61, %v62
    %v65 = vsub.f32 %v53, %v63
    %v66 = vsub.f32 %v54, %v64
    %v67 = vmul.f32 %v65, %v65
    %v68 = vmul.f32 %v66, %v66
    %v69 = vsel %vm55, %v67, 0.0
    %70 = vadd.xlane.f32.xlu0 %v69
    %v71 = vpop.xlane.xlu0 %70
    %v72 = vsel %vm55, %v68, 0.0
    %73 = vadd.xlane.f32.xlu0 %v72
    %v74 = vpop.xlane.xlu0 %73
    %v75 = vmul.f32 %v71, %v62
    %v76 = vmul.f32 %v74, %v62
    %v77 = vadd.f32 %v75, 1e-05
    %v78 = vadd.f32 %v76, 1e-05
    %v79 = vrsqrt.pop %v77
    %v80 = vrsqrt.pop %v78
    %v81 = vmul.f32 %v65, %v79
    %v82 = vmul.f32 %v66, %v80
    %v83 = vld [vmem:[%s2] sm:$0x1]
    %v85 = vlaneseq
    %v86 = vshrl.u32 %v85, 7
    %v87 = vsub.s32 0, %v86
    %v88 = vrot.slane %v83, %v87
    %v90 = vmul.f32 %v81, %v88
    %v91 = vmul.f32 %v82, %v88
    %v92 = vld [vmem:[%s3] sm:$0x1]
    %v94 = vlaneseq
    %v95 = vshrl.u32 %v94, 7
    %v96 = vsub.s32 0, %v95
    %v97 = vrot.slane %v92, %v96
    %v99 = vadd.f32 %v90, %v97
    %v100 = vadd.f32 %v91, %v97
    %v101 = vld [vmem:[#allocation6] sm:$0xff]
    %v102 = vld [vmem:[#allocation6 + $0x8] sm:$0xff]
    %v103 = vld [vmem:[#allocation6 + $0x10] sm:$0xff]
    %v104 = vld [vmem:[#allocation6 + $0x18] sm:$0xff]
    %v105 = vld [vmem:[%s5] sm:$0x1]
    %v107 = vlaneseq
    %v108 = vshrl.u32 %v107, 7
    %v109 = vsub.s32 0, %v108
    %v110 = vrot.slane %v105, %v109
    %v113 = vsel %vm55, %v99, 0
    %v116 = vsel %vm55, %v100, 0
    %118 = vmatprep.subr.mxu0 0.0
    %119 = vmatpush1.msra.mxu0 %v101
    %120 = vmatprep.subr.mxu0 0.0
    %121 = vmatpush1.msra.mxu0 %v102
    %122 = vmatprep.subr.mxu0 0.0
    %123 = vmatpush1.msra.mxu0 %v103
    %124 = vmatprep.subr.mxu0 0.0
    %125 = vmatpush1.msra.mxu0 %v104
    %126 = vmatprep.subr.mxu0 0.0
    %127 = vmatpush1.msra.mxu0 0.0
    %128 = vmatprep.subr.mxu0 0.0
    %129 = vmatpush1.msra.mxu0 0.0
    %130 = vmatprep.subr.mxu0 0.0
    %131 = vmatpush1.msra.mxu0 0.0
    %132 = vmatprep.subr.mxu0 0.0
    %133 = vmatpush1.msra.mxu0 0.0
    %134 = vmatprep.subr.mxu0 0.0
    %135 = vmatpush1.msra.mxu0 0.0
    %136 = vmatprep.subr.mxu0 0.0
    %137 = vmatpush1.msra.mxu0 0.0
    %138 = vmatprep.subr.mxu0 0.0
    %139 = vmatpush1.msra.mxu0 0.0
    %140 = vmatprep.subr.mxu0 0.0
    %141 = vmatpush1.msra.mxu0 0.0
    %142 = vmatprep.subr.mxu0 0.0
    %143 = vmatpush1.msra.mxu0 0.0
    %144 = vmatprep.subr.mxu0 0.0
    %145 = vmatpush1.msra.mxu0 0.0
    %146 = vmatprep.subr.mxu0 0.0
    %147 = vmatpush1.msra.mxu0 0.0
    %148 = vmatprep.subr.mxu0 0.0
    %149 = vmatpush1.msra.mxu0 0.0
    %150 = vmatprep.subr.mxu0 0.0
    %151 = vmatpush1.msra.mxu0 0.0
    %152 = vmatprep.subr.mxu0 0.0
    %153 = vmatpush1.msra.mxu0 0.0
    %154 = vmatprep.subr.mxu0 0.0
    %155 = vmatpush1.msra.mxu0 0.0
    %156 = vmatprep.subr.mxu0 0.0
    %157 = vmatpush1.msra.mxu0 0.0
    %158 = vmatprep.subr.mxu0 0.0
    %159 = vmatpush1.msra.mxu0 0.0
    %160 = vmatprep.subr.mxu0 0.0
    %161 = vmatpush1.msra.mxu0 0.0
    %162 = vmatprep.subr.mxu0 0.0
    %163 = vmatpush1.msra.mxu0 0.0
    %164 = vmatprep.subr.mxu0 0.0
    %165 = vmatpush1.msra.mxu0 0.0
    %166 = vmatprep.subr.mxu0 0.0
    %167 = vmatpush1.msra.mxu0 0.0
    %168 = vmatprep.subr.mxu0 0.0
    %169 = vmatpush1.msra.mxu0 0.0
    %170 = vmatprep.subr.mxu0 0.0
    %171 = vmatpush1.msra.mxu0 0.0
    %172 = vmatprep.subr.mxu0 0.0
    %173 = vmatpush1.msra.mxu0 0.0
    %174 = vmatprep.subr.mxu0 0.0
    %175 = vmatpush1.msra.mxu0 0.0
    %176 = vmatprep.subr.mxu0 0.0
    %177 = vmatpush1.msra.mxu0 0.0
    %178 = vmatprep.subr.mxu0 0.0
    %179 = vmatpush1.msra.mxu0 0.0
    %180 = vmatprep.subr.mxu0 0.0
    %181 = vmatpush1.msra.mxu0 0.0
    %182 = vmatprep.mubr.f32.mxu0 0.0
    %183 = vmatmul.mubr.f32.gmra.mrb[0].mxu0 %v113
    %v184 = vpop.f32.mrb[0].mxu0
    %v185 = vadd.f32 %v110, %v184
    %v186 = vpop.f32.mrb[0].mxu0
    %187 = vmatprep.mubr.f32.mxu0 0.0
    %188 = vmatmul.mubr.f32.gmra.mrb[0].mxu0 %v116
    %v189 = vpop.f32.mrb[0].mxu0
    %v190 = vadd.f32 %v110, %v189
    %v191 = vpop.f32.mrb[0].mxu0
    %192 = vdwg.mxu0
    %v193 = vlaneseq
    %v194 = vshrl.u32 %v193, 7
    %v195 = vadd.s32 %v194, 8
    %v196 = vlaneseq
    %v197 = vand.u32 %v196, 127
    %s198 = smul.u32 0, 16
    %v199 = vstv %s198
    %v200 = vadd.s32 %v194, %v199
    %v201 = vadd.s32 %v195, %v199
    %s202 = sld [smem:[#allocation2]]
    %v203 = vmul.u32 %v200, 32
    %v204 = vmul.u32 %v201, 32
    %v205 = vadd.s32 %v203, %v197
    %v206 = vadd.s32 %v204, %v197
    %s207 = smul.u32 %s202, 2654435769
    %v208 = vmul.u32 %v205, 2246822507
    %v209 = vmul.u32 %v206, 2246822507
    %v210 = vstv %s207
    %v211 = vadd.s32 %v208, %v210
    %v212 = vadd.s32 %v209, %v210
    %v213 = vshrl.u32 %v211, 16
    %v214 = vshrl.u32 %v212, 16
    %v215 = vxor.u32 %v211, %v213
    %v216 = vxor.u32 %v212, %v214
    %v217 = vmul.u32 %v215, 2146121005
    %v218 = vmul.u32 %v216, 2146121005
    %v219 = vshrl.u32 %v217, 15
    %v220 = vshrl.u32 %v218, 15
    %v221 = vxor.u32 %v217, %v219
    %v222 = vxor.u32 %v218, %v220
    %v223 = vmul.u32 %v221, 2221713035
    %v224 = vmul.u32 %v222, 2221713035
    %v225 = vshrl.u32 %v223, 16
    %v226 = vshrl.u32 %v224, 16
    %v227 = vxor.u32 %v223, %v225
    %v228 = vxor.u32 %v224, %v226
    %vm229 = vcmp.ge.u32.totalorder %v227, 429496729
    %vm230 = vcmp.ge.u32.totalorder %v228, 429496729
    %v231 = vmul.f32 %v185, 1.1111112
    %v232 = vmul.f32 %v190, 1.1111112
    %v233 = vsel %vm229, %v231, 0.0
    %v234 = vsel %vm230, %v232, 0.0
    %v235 = vadd.f32 %v53, %v233
    %v236 = vadd.f32 %v54, %v234
    %237 = vst.msk [vmem:[#allocation8] sm:$0xff] %vm55, %v235
    %238 = vst.msk [vmem:[#allocation8 + $0x8] sm:$0xff] %vm55, %v236
    // Predicated region
    $region34: #{tpu_custom_call.1} parent=1 // pred_check
      _
    $region35: #{tpu_custom_call.1} parent=1 // pred_check_branch
      %240 = sbr.rel (0) target = $region37
    $region36: #{tpu_custom_call.1} parent=1 // pred_region
      %s242 = ssub.s32 256, 256
      %243 = vsyncadd [#allocation5], %s242
      %s244 = sshll.u32 [#allocation8], 4
      %s245 = int_to_ptr.vmem [resolvable:$true] %s244
      %250 = dma.vmem_to_hbm [thread:$0]  %s245, 256, %s6, [#allocation5], 128, 128, 8
    $region37: #{tpu_custom_call.1} parent=1 // pred_fallthru
      _
    // Predicated region
    $region38: #{tpu_custom_call.1} parent=1 // pred_check
      _
    $region39: #{tpu_custom_call.1} parent=1 // pred_check_branch
      %252 = sbr.rel (0) target = $region41
    $region40: #{tpu_custom_call.1} parent=1 // pred_region
      %253 = dma.done [#allocation5], 256
    $region41: #{tpu_custom_call.1} parent=1 // pred_fallthru
      _
    %254 = vsyncpa [#allocation4], 1
    %255 = vsyncpa [#allocation7], 1
    %256 = vsyncpa [#allocation5], 1

</llo_original>
